<compile_context>
chip_gen: v6e
topology: v6e:2x2x1
jax: 0.10.0
libtpu: 0.0.40
codegen_flags: <defaults>
</compile_context>

<pallas_src>
import functools

import jax
import jax.numpy as jnp
import numpy as np
from jax.experimental import pallas as pl
from jax.experimental.pallas import tpu as pltpu


_VMEM_SPEC = pl.BlockSpec(memory_space=pltpu.MemorySpace.VMEM)

_SMALL_PER_MATRIX_BYTES = 1 * 1024 * 1024   # gridless fused path below this
_TILE_BYTE_BUDGET = 8 * 1024 * 1024         # double-buffered input blocks
_VMEM_LIMIT_BYTES = 32 * 1024 * 1024        # safe on v5e/v6e/v7x


# ----------------------------------------------------------------------------
# Shared math helpers (operate on values already loaded into vregs, f32)
# ----------------------------------------------------------------------------
def _sum_all(x):
    """Full reduce to a (1, 1) array (lane reduce then sublane reduce)."""
    return jnp.sum(jnp.sum(x, axis=-1, keepdims=True), axis=0, keepdims=True)


def _pair_loss_resident(m1, m2):
    """loss_contrastive_m with both [N, D] f32 matrices resident. -> (1,1)."""
    n = m1.shape[0]
    colsum1 = jnp.sum(m1, axis=0, keepdims=True)              # [1, D]
    colsum2 = jnp.sum(m2, axis=0, keepdims=True)              # [1, D]
    s1 = _sum_all(m1 * m1)                                    # ||m1||_F^2
    s2 = _sum_all(m2 * m2)                                    # ||m2||_F^2

    inv1sq = 1.0 / s1
    inv2sq = 1.0 / s2
    inv12 = 1.0 / jnp.sqrt(s1 * s2)

    pos = jnp.sum(m1 * m2, axis=-1, keepdims=True) * inv12    # [N,1]
    # merged off-diagonal rowsum (single cross-lane reduce per matrix)
    off1 = jnp.sum(m1 * (colsum1 - m1), axis=-1, keepdims=True)
    off2 = jnp.sum(m2 * (colsum2 - m2), axis=-1, keepdims=True)
    neg = (off1 * inv1sq + off2 * inv2sq) * (1.0 / (2.0 * n)) # [N,1]

    diff = neg - pos
    # numerically stable softplus
    sp = jnp.log1p(jnp.exp(-jnp.abs(diff))) + jnp.maximum(diff, 0.0)
    return _sum_all(sp) * (1.0 / n)                            # (1,1)


# ----------------------------------------------------------------------------
# Small (fused, gridless) kernels — one stacked slab, one DMA
# ----------------------------------------------------------------------------
def _dual_small_kernel(stk_ref, lc_ref, ld_ref):
    c1 = stk_ref[0].astype(jnp.float32)
    c2 = stk_ref[1].astype(jnp.float32)
    d1 = stk_ref[2].astype(jnp.float32)
    d2 = stk_ref[3].astype(jnp.float32)
    lc_ref[...] = _pair_loss_resident(c1, c2)
    ld_ref[...] = _pair_loss_resident(d1, d2)


def _single_small_kernel(stk_ref, out_ref):
    out_ref[...] = _pair_loss_resident(stk_ref[0].astype(jnp.float32),
                                       stk_ref[1].astype(jnp.float32))


def _run_dual_small(c1, c2, d1, d2):
    n, d = c1.shape
    stk = jnp.stack([c1, c2, d1, d2])        # one slab -> one input DMA
    itemsize = stk.dtype.itemsize
    cost = pl.CostEstimate(flops=24 * n * d, transcendentals=4 * n,
                           bytes_accessed=4 * n * d * itemsize + 8)
    lc, ld = pl.pallas_call(
        _dual_small_kernel,
        out_shape=(jax.ShapeDtypeStruct((1, 1), jnp.float32),
                   jax.ShapeDtypeStruct((1, 1), jnp.float32)),
        in_specs=[_VMEM_SPEC],
        out_specs=(_VMEM_SPEC, _VMEM_SPEC),
        compiler_params=pltpu.CompilerParams(vmem_limit_bytes=_VMEM_LIMIT_BYTES),
        cost_estimate=cost,
    )(stk)
    return lc[0, 0], ld[0, 0]


def _run_single_small(m1, m2):
    n, d = m1.shape
    stk = jnp.stack([m1, m2])
    itemsize = stk.dtype.itemsize
    cost = pl.CostEstimate(flops=12 * n * d, transcendentals=2 * n,
                           bytes_accessed=2 * n * d * itemsize + 4)
    out = pl.pallas_call(
        _single_small_kernel,
        out_shape=jax.ShapeDtypeStruct((1, 1), jnp.float32),
        in_specs=[_VMEM_SPEC],
        out_specs=_VMEM_SPEC,
        compiler_params=pltpu.CompilerParams(vmem_limit_bytes=_VMEM_LIMIT_BYTES),
        cost_estimate=cost,
    )(stk)
    return out[0, 0]


# ----------------------------------------------------------------------------
# Large (streaming, two-phase tiled) kernel for one (m1, m2) pair
# ----------------------------------------------------------------------------
def _pair_tiled_kernel(m1_ref, m2_ref, out_ref,
                       cs1_ref, cs2_ref, s1_ref, s2_ref, acc_ref,
                       *, n_rows, tile_rows):
    p = pl.program_id(0)        # 0: colsum / Frobenius pass, 1: loss pass
    t = pl.program_id(1)        # row-tile index

    m1 = m1_ref[...].astype(jnp.float32)
    m2 = m2_ref[...].astype(jnp.float32)

    needs_mask = (n_rows % tile_rows) != 0      # static (trace-time) condition
    if needs_mask:
        rows = jax.lax.broadcasted_iota(jnp.int32, (tile_rows, 1), 0)
        valid = (rows + t * tile_rows) < n_rows
        m1 = jnp.where(valid, m1, 0.0)
        m2 = jnp.where(valid, m2, 0.0)

    @pl.when(jnp.logical_and(p == 0, t == 0))
    def _init():
        cs1_ref[...] = jnp.zeros_like(cs1_ref)
        cs2_ref[...] = jnp.zeros_like(cs2_ref)
        s1_ref[...] = jnp.zeros_like(s1_ref)
        s2_ref[...] = jnp.zeros_like(s2_ref)
        acc_ref[...] = jnp.zeros_like(acc_ref)

    @pl.when(p == 0)
    def _phase0():
        cs1_ref[...] += jnp.sum(m1, axis=0, keepdims=True)
        cs2_ref[...] += jnp.sum(m2, axis=0, keepdims=True)
        s1_ref[...] += _sum_all(m1 * m1)
        s2_ref[...] += _sum_all(m2 * m2)

    @pl.when(p == 1)
    def _phase1():
        s1 = s1_ref[...]
        s2 = s2_ref[...]
        inv1sq = 1.0 / s1
        inv2sq = 1.0 / s2
        inv12 = 1.0 / jnp.sqrt(s1 * s2)

        pos = jnp.sum(m1 * m2, axis=-1, keepdims=True) * inv12
        off1 = jnp.sum(m1 * (cs1_ref[...] - m1), axis=-1, keepdims=True)
        off2 = jnp.sum(m2 * (cs2_ref[...] - m2), axis=-1, keepdims=True)
        neg = (off1 * inv1sq + off2 * inv2sq) * (1.0 / (2.0 * n_rows))

        diff = neg - pos
        sp = jnp.log1p(jnp.exp(-jnp.abs(diff))) + jnp.maximum(diff, 0.0)
        if needs_mask:
            sp = jnp.where(valid, sp, 0.0)      # padded rows contribute nothing
        acc_ref[...] += _sum_all(sp)
        # Written every phase-1 tile; the value after the last tile is final.
        out_ref[...] = acc_ref[...] * (1.0 / n_rows)


def _choose_tile_rows(n, d, itemsize):
    """Largest row tile whose double-buffered blocks fit the VMEM budget."""
    per_row = 2 * 2 * d * itemsize          # 2 inputs x 2 pipeline buffers
    tn = _TILE_BYTE_BUDGET // max(per_row, 1)
    tn = int(min(max(tn, 32), 1024))
    tn = max((tn // 32) * 32, 32)           # sublane-pack safe for <=32-bit dtypes
    if tn >= n:
        return n                            # single tile (full dim is always legal)
    return tn


def _run_pair_tiled(m1, m2, tile_rows=None):
    n, d = m1.shape
    itemsize = m1.dtype.itemsize
    tn = tile_rows if tile_rows is not None else _choose_tile_rows(n, d, itemsize)
    if tn < n:
        assert tn % 8 == 0, "row tile must be a multiple of 8"
    num_tiles = pl.cdiv(n, tn)

    kernel = functools.partial(_pair_tiled_kernel, n_rows=n, tile_rows=tn)
    cost = pl.CostEstimate(flops=12 * n * d, transcendentals=2 * n,
                           bytes_accessed=2 * 2 * n * d * itemsize + 4)

    out = pl.pallas_call(
        kernel,
        out_shape=jax.ShapeDtypeStruct((1, 1), jnp.float32),
        grid_spec=pltpu.PrefetchScalarGridSpec(
            num_scalar_prefetch=0,
            grid=(2, num_tiles),
            in_specs=[pl.BlockSpec((tn, d), lambda p, t: (t, 0)),
                      pl.BlockSpec((tn, d), lambda p, t: (t, 0))],
            out_specs=pl.BlockSpec((1, 1), lambda p, t: (0, 0)),
            scratch_shapes=[pltpu.VMEM((1, d), jnp.float32),   # colsum(m1)
                            pltpu.VMEM((1, d), jnp.float32),   # colsum(m2)
                            pltpu.VMEM((1, 1), jnp.float32),   # ||m1||_F^2
                            pltpu.VMEM((1, 1), jnp.float32),   # ||m2||_F^2
                            pltpu.VMEM((1, 1), jnp.float32)],  # loss accumulator
        ),
        compiler_params=pltpu.CompilerParams(
            dimension_semantics=("arbitrary", "arbitrary"),
            vmem_limit_bytes=_VMEM_LIMIT_BYTES),
        cost_estimate=cost,
    )(m1, m2)
    return out[0, 0]


# ----------------------------------------------------------------------------
# Public API mirroring the PyTorch module
# ----------------------------------------------------------------------------
def loss_contrastive_m(m1, m2, *, tile_rows=None):
    """Pallas-backed equivalent of the PyTorch loss_contrastive_m."""
    assert m1.ndim == 2 and m1.shape == m2.shape
    n, d = m1.shape
    itemsize = max(m1.dtype.itemsize, m2.dtype.itemsize)
    if tile_rows is None and n * d * itemsize <= _SMALL_PER_MATRIX_BYTES:
        return _run_single_small(m1, m2)
    return _run_pair_tiled(m1, m2, tile_rows=tile_rows)


def acmf_forward(sim_data, c_embedding1, d_embedding1, c_embedding2, d_embedding2):
    """Mirrors ACMF.forward: returns (lossc, lossd, c1, c2, d1, d2)."""
    del sim_data   # unused by the reference forward (pass-through only)

    same_shape = (c_embedding1.ndim == 2 and
                  c_embedding1.shape == c_embedding2.shape ==
                  d_embedding1.shape == d_embedding2.shape)
    if same_shape:
        n, d = c_embedding1.shape
        itemsize = max(c_embedding1.dtype.itemsize, d_embedding1.dtype.itemsize)
        if n * d * itemsize <= _SMALL_PER_MATRIX_BYTES:
            # launch-overhead regime: one slab, one fused kernel, both losses
            lossc, lossd = _run_dual_small(c_embedding1, c_embedding2,
                                           d_embedding1, d_embedding2)
            return (lossc, lossd, c_embedding1, c_embedding2,
                    d_embedding1, d_embedding2)

    # large (or mismatched-shape) inputs: streamed tiled kernel per pair
    lossc = loss_contrastive_m(c_embedding1, c_embedding2)
    lossd = loss_contrastive_m(d_embedding1, d_embedding2)
    return (lossc, lossd, c_embedding1, c_embedding2, d_embedding1, d_embedding2)


class ACMF:
    """Thin stateless wrapper mirroring the nn.Module interface."""

    def __init__(self, args=None):
        self.args = args

    def __call__(self, sim_data, c_embedding1, d_embedding1,
                 c_embedding2, d_embedding2):
        return acmf_forward(sim_data, c_embedding1, d_embedding1,
                            c_embedding2, d_embedding2)


# ----------------------------------------------------------------------------
# Pure-JAX reference (matches the PyTorch code) + self-test
# ----------------------------------------------------------------------------
def _loss_contrastive_m_ref(m1, m2):
    m1 = m1 / jnp.linalg.norm(m1)
    m2 = m2 / jnp.linalg.norm(m2)
    pos = jnp.sum(m1 * m2, axis=1)
    g1 = m1 @ m1.T
    g2 = m2 @ m2.T
    g1 = g1 - jnp.diag(jnp.diag(g1))
    g2 = g2 - jnp.diag(jnp.diag(g2))
    neg = jnp.mean(jnp.concatenate([g1, g2], axis=1), axis=1)
    return jnp.mean(jax.nn.softplus(neg - pos))


if __name__ == "__main__":
    key = jax.random.PRNGKey(0)
    k = jax.random.split(key, 7)

    # Small shapes consistent with the module's forward.
    N, D = 8, 32
    sim_data = jax.random.normal(k[0], (2, 4, 16, 16), dtype=jnp.float32)  # unused pass-through
    c1 = jax.random.normal(k[1], (N, D), dtype=jnp.float32)
    c2 = jax.random.normal(k[2], (N, D), dtype=jnp.float32)
    d1 = jax.random.normal(k[3], (N, D), dtype=jnp.float32)
    d2 = jax.random.normal(k[4], (N, D), dtype=jnp.float32)

    model = ACMF(args=None)
    lossc, lossd, oc1, oc2, od1, od2 = model(sim_data, c1, d1, c2, d2)
    jax.block_until_ready((lossc, lossd, oc1, oc2, od1, od2))

    ref_c = _loss_contrastive_m_ref(c1, c2)
    ref_d = _loss_contrastive_m_ref(d1, d2)
    np.testing.assert_allclose(np.asarray(lossc), np.asarray(ref_c), rtol=1e-4, atol=1e-5)
    np.testing.assert_allclose(np.asarray(lossd), np.asarray(ref_d), rtol=1e-4, atol=1e-5)

    # Exercise the streaming two-phase tiled path (incl. a partial last row
    # tile -> masking) in f32 and in native bf16 (no wrapper up-cast).
    N2, D2 = 40, 128
    e1 = jax.random.normal(k[5], (N2, D2), dtype=jnp.float32)
    e2 = jax.random.normal(k[6], (N2, D2), dtype=jnp.float32)

    tiled_f32 = _run_pair_tiled(e1, e2, tile_rows=16)
    jax.block_until_ready(tiled_f32)
    np.testing.assert_allclose(np.asarray(tiled_f32),
                               np.asarray(_loss_contrastive_m_ref(e1, e2)),
                               rtol=1e-4, atol=1e-5)

    e1_bf, e2_bf = e1.astype(jnp.bfloat16), e2.astype(jnp.bfloat16)
    tiled_bf16 = _run_pair_tiled(e1_bf, e2_bf, tile_rows=16)
    jax.block_until_ready(tiled_bf16)
    ref_bf = _loss_contrastive_m_ref(e1_bf.astype(jnp.float32),
                                     e2_bf.astype(jnp.float32))
    np.testing.assert_allclose(np.asarray(tiled_bf16), np.asarray(ref_bf),
                               rtol=1e-3, atol=1e-4)

    # Also exercise the public single-pair entry point (small fused path).
    single = loss_contrastive_m(c1, c2)
    jax.block_until_ready(single)
    np.testing.assert_allclose(np.asarray(single), np.asarray(ref_c), rtol=1e-4, atol=1e-5)

    print("KERNEL_OK")
</pallas_src>

<mosaic_0001>
module attributes {stable_mosaic.version = 11 : i64} {
  func.func @_dual_small_kernel(%arg0: memref<4x8x32xf32, #tpu.memory_space<vmem>>, %arg1: memref<1x1xf32, #tpu.memory_space<vmem>>, %arg2: memref<1x1xf32, #tpu.memory_space<vmem>>) attributes {dimension_semantics = [], scalar_prefetch = 0 : i64, scratch_operands = 0 : i64, tpu.core_type = #tpu.core_type<tc>} {
    %c0 = arith.constant 0 : index
    %c0_0 = arith.constant 0 : index
    %c0_1 = arith.constant 0 : index
    %0 = vector.load %arg0[%c0, %c0_0, %c0_1] : memref<4x8x32xf32, #tpu.memory_space<vmem>>, vector<1x8x32xf32>
    %1 = vector.shape_cast %0 : vector<1x8x32xf32> to vector<8x32xf32>
    %c1 = arith.constant 1 : index
    %c0_2 = arith.constant 0 : index
    %c0_3 = arith.constant 0 : index
    %2 = vector.load %arg0[%c1, %c0_2, %c0_3] : memref<4x8x32xf32, #tpu.memory_space<vmem>>, vector<1x8x32xf32>
    %3 = vector.shape_cast %2 : vector<1x8x32xf32> to vector<8x32xf32>
    %c2 = arith.constant 2 : index
    %c0_4 = arith.constant 0 : index
    %c0_5 = arith.constant 0 : index
    %4 = vector.load %arg0[%c2, %c0_4, %c0_5] : memref<4x8x32xf32, #tpu.memory_space<vmem>>, vector<1x8x32xf32>
    %5 = vector.shape_cast %4 : vector<1x8x32xf32> to vector<8x32xf32>
    %c3 = arith.constant 3 : index
    %c0_6 = arith.constant 0 : index
    %c0_7 = arith.constant 0 : index
    %6 = vector.load %arg0[%c3, %c0_6, %c0_7] : memref<4x8x32xf32, #tpu.memory_space<vmem>>, vector<1x8x32xf32>
    %7 = vector.shape_cast %6 : vector<1x8x32xf32> to vector<8x32xf32>
    %cst = arith.constant dense<0.000000e+00> : vector<32xf32>
    %8 = vector.multi_reduction <add>, %1, %cst [0] : vector<8x32xf32> to vector<32xf32>
    %9 = vector.shape_cast %8 : vector<32xf32> to vector<1x32xf32>
    %cst_8 = arith.constant dense<0.000000e+00> : vector<32xf32>
    %10 = vector.multi_reduction <add>, %3, %cst_8 [0] : vector<8x32xf32> to vector<32xf32>
    %11 = vector.shape_cast %10 : vector<32xf32> to vector<1x32xf32>
    %12 = arith.mulf %1, %1 : vector<8x32xf32>
    %cst_9 = arith.constant dense<0.000000e+00> : vector<8xf32>
    %13 = vector.multi_reduction <add>, %12, %cst_9 [1] : vector<8x32xf32> to vector<8xf32>
    %14 = vector.shape_cast %13 : vector<8xf32> to vector<8x1xf32>
    %cst_10 = arith.constant dense<0.000000e+00> : vector<1xf32>
    %15 = vector.multi_reduction <add>, %14, %cst_10 [0] : vector<8x1xf32> to vector<1xf32>
    %16 = vector.shape_cast %15 : vector<1xf32> to vector<1x1xf32>
    %17 = arith.mulf %3, %3 : vector<8x32xf32>
    %cst_11 = arith.constant dense<0.000000e+00> : vector<8xf32>
    %18 = vector.multi_reduction <add>, %17, %cst_11 [1] : vector<8x32xf32> to vector<8xf32>
    %19 = vector.shape_cast %18 : vector<8xf32> to vector<8x1xf32>
    %cst_12 = arith.constant dense<0.000000e+00> : vector<1xf32>
    %20 = vector.multi_reduction <add>, %19, %cst_12 [0] : vector<8x1xf32> to vector<1xf32>
    %21 = vector.shape_cast %20 : vector<1xf32> to vector<1x1xf32>
    %cst_13 = arith.constant 1.000000e+00 : f32
    %22 = vector.broadcast %cst_13 : f32 to vector<1x1xf32>
    %23 = arith.divf %22, %16 : vector<1x1xf32>
    %cst_14 = arith.constant 1.000000e+00 : f32
    %24 = vector.broadcast %cst_14 : f32 to vector<1x1xf32>
    %25 = arith.divf %24, %21 : vector<1x1xf32>
    %26 = arith.mulf %16, %21 : vector<1x1xf32>
    %27 = math.sqrt %26 : vector<1x1xf32>
    %cst_15 = arith.constant 1.000000e+00 : f32
    %28 = vector.broadcast %cst_15 : f32 to vector<1x1xf32>
    %29 = arith.divf %28, %27 : vector<1x1xf32>
    %30 = arith.mulf %1, %3 : vector<8x32xf32>
    %cst_16 = arith.constant dense<0.000000e+00> : vector<8xf32>
    %31 = vector.multi_reduction <add>, %30, %cst_16 [1] : vector<8x32xf32> to vector<8xf32>
    %32 = vector.shape_cast %31 : vector<8xf32> to vector<8x1xf32>
    %33 = vector.broadcast %29 : vector<1x1xf32> to vector<8x1xf32>
    %34 = arith.mulf %32, %33 : vector<8x1xf32>
    %35 = vector.broadcast %9 : vector<1x32xf32> to vector<8x32xf32>
    %36 = arith.subf %35, %1 : vector<8x32xf32>
    %37 = arith.mulf %1, %36 : vector<8x32xf32>
    %cst_17 = arith.constant dense<0.000000e+00> : vector<8xf32>
    %38 = vector.multi_reduction <add>, %37, %cst_17 [1] : vector<8x32xf32> to vector<8xf32>
    %39 = vector.shape_cast %38 : vector<8xf32> to vector<8x1xf32>
    %40 = vector.broadcast %11 : vector<1x32xf32> to vector<8x32xf32>
    %41 = arith.subf %40, %3 : vector<8x32xf32>
    %42 = arith.mulf %3, %41 : vector<8x32xf32>
    %cst_18 = arith.constant dense<0.000000e+00> : vector<8xf32>
    %43 = vector.multi_reduction <add>, %42, %cst_18 [1] : vector<8x32xf32> to vector<8xf32>
    %44 = vector.shape_cast %43 : vector<8xf32> to vector<8x1xf32>
    %45 = vector.broadcast %23 : vector<1x1xf32> to vector<8x1xf32>
    %46 = arith.mulf %39, %45 : vector<8x1xf32>
    %47 = vector.broadcast %25 : vector<1x1xf32> to vector<8x1xf32>
    %48 = arith.mulf %44, %47 : vector<8x1xf32>
    %49 = arith.addf %46, %48 : vector<8x1xf32>
    %cst_19 = arith.constant 6.250000e-02 : f32
    %50 = vector.broadcast %cst_19 : f32 to vector<8x1xf32>
    %51 = arith.mulf %49, %50 : vector<8x1xf32>
    %52 = arith.subf %51, %34 : vector<8x1xf32>
    %53 = math.absf %52 : vector<8x1xf32>
    %cst_20 = arith.constant 0.000000e+00 : f32
    %54 = vector.broadcast %cst_20 : f32 to vector<8x1xf32>
    %55 = arith.subf %54, %53 : vector<8x1xf32>
    %56 = math.exp %55 : vector<8x1xf32>
    %57 = math.log1p %56 : vector<8x1xf32>
    %cst_21 = arith.constant 0.000000e+00 : f32
    %58 = vector.broadcast %cst_21 : f32 to vector<8x1xf32>
    %59 = arith.maximumf %52, %58 : vector<8x1xf32>
    %60 = arith.addf %57, %59 : vector<8x1xf32>
    %cst_22 = arith.constant dense<0.000000e+00> : vector<8xf32>
    %61 = vector.multi_reduction <add>, %60, %cst_22 [1] : vector<8x1xf32> to vector<8xf32>
    %62 = vector.shape_cast %61 : vector<8xf32> to vector<8x1xf32>
    %cst_23 = arith.constant dense<0.000000e+00> : vector<1xf32>
    %63 = vector.multi_reduction <add>, %62, %cst_23 [0] : vector<8x1xf32> to vector<1xf32>
    %64 = vector.shape_cast %63 : vector<1xf32> to vector<1x1xf32>
    %cst_24 = arith.constant 1.250000e-01 : f32
    %65 = vector.broadcast %cst_24 : f32 to vector<1x1xf32>
    %66 = arith.mulf %64, %65 : vector<1x1xf32>
    %c0_25 = arith.constant 0 : index
    %c0_26 = arith.constant 0 : index
    %67 = vector.load %arg1[%c0_25, %c0_26] : memref<1x1xf32, #tpu.memory_space<vmem>>, vector<1x1xf32>
    tpu.vector_store %arg1[%c0_25, %c0_26], %66 {strides = array<i32>} : memref<1x1xf32, #tpu.memory_space<vmem>>, vector<1x1xf32>,
    %cst_27 = arith.constant dense<0.000000e+00> : vector<32xf32>
    %68 = vector.multi_reduction <add>, %5, %cst_27 [0] : vector<8x32xf32> to vector<32xf32>
    %69 = vector.shape_cast %68 : vector<32xf32> to vector<1x32xf32>
    %cst_28 = arith.constant dense<0.000000e+00> : vector<32xf32>
    %70 = vector.multi_reduction <add>, %7, %cst_28 [0] : vector<8x32xf32> to vector<32xf32>
    %71 = vector.shape_cast %70 : vector<32xf32> to vector<1x32xf32>
    %72 = arith.mulf %5, %5 : vector<8x32xf32>
    %cst_29 = arith.constant dense<0.000000e+00> : vector<8xf32>
    %73 = vector.multi_reduction <add>, %72, %cst_29 [1] : vector<8x32xf32> to vector<8xf32>
    %74 = vector.shape_cast %73 : vector<8xf32> to vector<8x1xf32>
    %cst_30 = arith.constant dense<0.000000e+00> : vector<1xf32>
    %75 = vector.multi_reduction <add>, %74, %cst_30 [0] : vector<8x1xf32> to vector<1xf32>
    %76 = vector.shape_cast %75 : vector<1xf32> to vector<1x1xf32>
    %77 = arith.mulf %7, %7 : vector<8x32xf32>
    %cst_31 = arith.constant dense<0.000000e+00> : vector<8xf32>
    %78 = vector.multi_reduction <add>, %77, %cst_31 [1] : vector<8x32xf32> to vector<8xf32>
    %79 = vector.shape_cast %78 : vector<8xf32> to vector<8x1xf32>
    %cst_32 = arith.constant dense<0.000000e+00> : vector<1xf32>
    %80 = vector.multi_reduction <add>, %79, %cst_32 [0] : vector<8x1xf32> to vector<1xf32>
    %81 = vector.shape_cast %80 : vector<1xf32> to vector<1x1xf32>
    %cst_33 = arith.constant 1.000000e+00 : f32
    %82 = vector.broadcast %cst_33 : f32 to vector<1x1xf32>
    %83 = arith.divf %82, %76 : vector<1x1xf32>
    %cst_34 = arith.constant 1.000000e+00 : f32
    %84 = vector.broadcast %cst_34 : f32 to vector<1x1xf32>
    %85 = arith.divf %84, %81 : vector<1x1xf32>
    %86 = arith.mulf %76, %81 : vector<1x1xf32>
    %87 = math.sqrt %86 : vector<1x1xf32>
    %cst_35 = arith.constant 1.000000e+00 : f32
    %88 = vector.broadcast %cst_35 : f32 to vector<1x1xf32>
    %89 = arith.divf %88, %87 : vector<1x1xf32>
    %90 = arith.mulf %5, %7 : vector<8x32xf32>
    %cst_36 = arith.constant dense<0.000000e+00> : vector<8xf32>
    %91 = vector.multi_reduction <add>, %90, %cst_36 [1] : vector<8x32xf32> to vector<8xf32>
    %92 = vector.shape_cast %91 : vector<8xf32> to vector<8x1xf32>
    %93 = vector.broadcast %89 : vector<1x1xf32> to vector<8x1xf32>
    %94 = arith.mulf %92, %93 : vector<8x1xf32>
    %95 = vector.broadcast %69 : vector<1x32xf32> to vector<8x32xf32>
    %96 = arith.subf %95, %5 : vector<8x32xf32>
    %97 = arith.mulf %5, %96 : vector<8x32xf32>
    %cst_37 = arith.constant dense<0.000000e+00> : vector<8xf32>
    %98 = vector.multi_reduction <add>, %97, %cst_37 [1] : vector<8x32xf32> to vector<8xf32>
    %99 = vector.shape_cast %98 : vector<8xf32> to vector<8x1xf32>
    %100 = vector.broadcast %71 : vector<1x32xf32> to vector<8x32xf32>
    %101 = arith.subf %100, %7 : vector<8x32xf32>
    %102 = arith.mulf %7, %101 : vector<8x32xf32>
    %cst_38 = arith.constant dense<0.000000e+00> : vector<8xf32>
    %103 = vector.multi_reduction <add>, %102, %cst_38 [1] : vector<8x32xf32> to vector<8xf32>
    %104 = vector.shape_cast %103 : vector<8xf32> to vector<8x1xf32>
    %105 = vector.broadcast %83 : vector<1x1xf32> to vector<8x1xf32>
    %106 = arith.mulf %99, %105 : vector<8x1xf32>
    %107 = vector.broadcast %85 : vector<1x1xf32> to vector<8x1xf32>
    %108 = arith.mulf %104, %107 : vector<8x1xf32>
    %109 = arith.addf %106, %108 : vector<8x1xf32>
    %cst_39 = arith.constant 6.250000e-02 : f32
    %110 = vector.broadcast %cst_39 : f32 to vector<8x1xf32>
    %111 = arith.mulf %109, %110 : vector<8x1xf32>
    %112 = arith.subf %111, %94 : vector<8x1xf32>
    %113 = math.absf %112 : vector<8x1xf32>
    %cst_40 = arith.constant 0.000000e+00 : f32
    %114 = vector.broadcast %cst_40 : f32 to vector<8x1xf32>
    %115 = arith.subf %114, %113 : vector<8x1xf32>
    %116 = math.exp %115 : vector<8x1xf32>
    %117 = math.log1p %116 : vector<8x1xf32>
    %cst_41 = arith.constant 0.000000e+00 : f32
    %118 = vector.broadcast %cst_41 : f32 to vector<8x1xf32>
    %119 = arith.maximumf %112, %118 : vector<8x1xf32>
    %120 = arith.addf %117, %119 : vector<8x1xf32>
    %cst_42 = arith.constant dense<0.000000e+00> : vector<8xf32>
    %121 = vector.multi_reduction <add>, %120, %cst_42 [1] : vector<8x1xf32> to vector<8xf32>
    %122 = vector.shape_cast %121 : vector<8xf32> to vector<8x1xf32>
    %cst_43 = arith.constant dense<0.000000e+00> : vector<1xf32>
    %123 = vector.multi_reduction <add>, %122, %cst_43 [0] : vector<8x1xf32> to vector<1xf32>
    %124 = vector.shape_cast %123 : vector<1xf32> to vector<1x1xf32>
    %cst_44 = arith.constant 1.250000e-01 : f32
    %125 = vector.broadcast %cst_44 : f32 to vector<1x1xf32>
    %126 = arith.mulf %124, %125 : vector<1x1xf32>
    %c0_45 = arith.constant 0 : index
    %c0_46 = arith.constant 0 : index
    %127 = vector.load %arg2[%c0_45, %c0_46] : memref<1x1xf32, #tpu.memory_space<vmem>>, vector<1x1xf32>
    tpu.vector_store %arg2[%c0_45, %c0_46], %126 {strides = array<i32>} : memref<1x1xf32, #tpu.memory_space<vmem>>, vector<1x1xf32>,
    return
  }
}

</mosaic_0001>

<llo_original>
// kernel: tpu_custom_call.1
$region0: #{tpu_custom_call.1}
  #allocation0 [shape = 'u32[]', space=smem, size = 0x4, offset = 0x4, fixed_abs, tag = 'smem constant byte address 0x4 - core index']
  #allocation1 [shape = 'u32[144,128]{1,0:T(1,128)}', space=vmem, size = 0x12000, scoped, tag = 'internal scratch']
  %s0 = inlined_call_operand.hbm [shape: f32[4,8,32], index: 0, kind: input, shape index: {}]
  %s1 = inlined_call_operand.hbm [shape: f32[1,1], index: 1, kind: output, shape index: {0}]
  %s2 = inlined_call_operand.hbm [shape: f32[1,1], index: 2, kind: output, shape index: {1}]
  %3 = xla_tuple %s1, %s2
  %s4 = sld [smem:[#allocation0]]
  $region26: #{tpu_custom_call.1} parent=0
    _
  %s6 = ssub.s32 1, %s4
  %s7 = scalar_select 0, %s6, %s4
  $region1: #{tpu_custom_call.1} parent=0
    #allocation2 [shape = 'u8[16384]{0}', space=vmem, size = 0x4000, scoped, tag = 'input window, operand 0, single buffered']
    #allocation3 [shape = 's32[1]{0}', space=sflag, size = 0x4, scoped, tag = 'scoped memory for tpu_custom_call.1']
    #allocation4 [shape = 's32[1]{0}', space=sflag, size = 0x4, scoped, tag = 'scoped memory for tpu_custom_call.1']
    #allocation5 [shape = 'u8[512]{0}', space=vmem, size = 0x400, scoped, tag = 'output window, operand 0, single buffered']
    #allocation6 [shape = 'u8[512]{0}', space=vmem, size = 0x400, scoped, tag = 'output window, operand 1, single buffered']
    #allocation7 [shape = 's32[1]{0}', space=sflag, size = 0x4, scoped, tag = 'scoped memory for tpu_custom_call.1']
    %8 = vsyncpa [#allocation3], 0
    %9 = vsyncpa [#allocation4], 0
    %10 = vsyncpa [#allocation7], 0
    // Predicated region
    $region2: #{tpu_custom_call.1} parent=1 // pred_check
      _
    $region3: #{tpu_custom_call.1} parent=1 // pred_check_branch
      %12 = sbr.rel (0) target = $region5
    $region4: #{tpu_custom_call.1} parent=1 // pred_region
      %s14 = ssub.s32 512, 512
      %15 = vsyncadd [#allocation3], %s14
      %s16 = sshll.u32 [#allocation2], 4
      %s17 = int_to_ptr.vmem [resolvable:$true] %s16
      %22 = dma.hbm_to_vmem [thread:$0]  %s0, 512, %s17, [#allocation3], 128, 128, 8
    $region5: #{tpu_custom_call.1} parent=1 // pred_fallthru
      _
    // Predicated region
    $region6: #{tpu_custom_call.1} parent=1 // pred_check
      _
    $region7: #{tpu_custom_call.1} parent=1 // pred_check_branch
      %24 = sbr.rel (0) target = $region9
    $region8: #{tpu_custom_call.1} parent=1 // pred_region
      %25 = dma.done [#allocation3], 512
    $region9: #{tpu_custom_call.1} parent=1 // pred_fallthru
      _
    %v26 = vld [vmem:[#allocation2] sm:$0xff]
    %s27 = scalar_lea.vmem [#allocation2], 8
    %v28 = vld [vmem:[%s27] sm:$0xff]
    %s29 = scalar_lea.vmem [#allocation2], 16
    %v30 = vld [vmem:[%s29] sm:$0xff]
    %s31 = scalar_lea.vmem [#allocation2], 24
    %v32 = vld [vmem:[%s31] sm:$0xff]
    %vm33 = vcmask 261120
    %v34 = vsel %vm33, %v26, 0.0
    %v35 = vrot.slane %v34, 4
    %v36 = vadd.f32 %v34, %v35
    %v37 = vrot.slane %v36, 2
    %v38 = vadd.f32 %v36, %v37
    %v39 = vrot.slane %v38, 1
    %v40 = vadd.f32 %v38, %v39
    %v41 = vsel %vm33, %v28, 0.0
    %v42 = vrot.slane %v41, 4
    %v43 = vadd.f32 %v41, %v42
    %v44 = vrot.slane %v43, 2
    %v45 = vadd.f32 %v43, %v44
    %v46 = vrot.slane %v45, 1
    %v47 = vadd.f32 %v45, %v46
    %v48 = vmul.f32 %v26, %v26
    %v49 = vsel %vm33, %v48, 0.0
    %50 = vadd.xlane.f32.xlu0 %v49
    %v51 = vpop.xlane.xlu0 %50
    %v52 = vrot.slane %v51, 4
    %v53 = vadd.f32 %v51, %v52
    %v54 = vrot.slane %v53, 2
    %v55 = vadd.f32 %v53, %v54
    %v56 = vrot.slane %v55, 1
    %v57 = vadd.f32 %v55, %v56
    %v58 = vmul.f32 %v28, %v28
    %v59 = vsel %vm33, %v58, 0.0
    %60 = vadd.xlane.f32.xlu0 %v59
    %v61 = vpop.xlane.xlu0 %60
    %v62 = vrot.slane %v61, 4
    %v63 = vadd.f32 %v61, %v62
    %v64 = vrot.slane %v63, 2
    %v65 = vadd.f32 %v63, %v64
    %v66 = vrot.slane %v65, 1
    %v67 = vadd.f32 %v65, %v66
    %v68 = vrcp.pop %v57
    %v69 = vmul.f32 1.0, %v68
    %v70 = vrcp.pop %v67
    %v71 = vmul.f32 1.0, %v70
    %v72 = vmul.f32 %v57, %v67
    %v73 = vrsqrt.pop %v72
    %v74 = vmul.f32 %v72, %v73
    %vm75 = vcmp.eq.f32.partialorder %v72, inf
    %v76 = vsel %vm75, %v72, %v74
    %vm77 = vcmp.eq.f32.partialorder %v72, 0.0
    %v78 = vand.u32 %v72, 2147483648
    %v79 = vsel %vm77, %v78, %v76
    %v80 = vrcp.pop %v79
    %v81 = vmul.f32 1.0, %v80
    %v82 = vmul.f32 %v26, %v28
    %v83 = vsel %vm33, %v82, 0.0
    %84 = vadd.xlane.f32.xlu0 %v83
    %v85 = vpop.xlane.xlu0 %84
    %v86 = vmul.f32 %v85, %v81
    %v87 = vsub.f32 %v40, %v26
    %v88 = vmul.f32 %v26, %v87
    %v89 = vsel %vm33, %v88, 0.0
    %90 = vadd.xlane.f32.xlu0 %v89
    %v91 = vpop.xlane.xlu0 %90
    %v92 = vsub.f32 %v47, %v28
    %v93 = vmul.f32 %v28, %v92
    %v94 = vsel %vm33, %v93, 0.0
    %95 = vadd.xlane.f32.xlu0 %v94
    %v96 = vpop.xlane.xlu0 %95
    %v97 = vmul.f32 %v91, %v69
    %v98 = vmul.f32 %v96, %v71
    %v99 = vadd.f32 %v97, %v98
    %v100 = vmul.f32 %v99, 0.0625
    %v101 = vsub.f32 %v100, %v86
    %v102 = vand.u32 2147483647, %v101
    %v103 = vsub.f32 0.0, %v102
    %v104 = vmul.f32 %v103, 1.442695
    %v105 = vpow.pop %v104
    %v106 = vadd.f32 %v105, 1.0
    %v107 = vlog2.pop %v106
    %v108 = vmul.f32 %v107, 0.6931472
    %v109 = vmul.f32 -0.5, %v105
    %v110 = vadd.f32 %v109, 1.0
    %v111 = vmul.f32 %v110, %v105
    %v112 = vand.u32 2147483647, %v105
    %vm113 = vcmp.lt.f32.partialorder %v112, 0.0004427343
    %v114 = vsel %vm113, %v111, %v108
    %v115 = vmax.f32 %v101, 0.0
    %v116 = vadd.f32 %v114, %v115
    %v117 = vadd.f32 %v116, 0.0
    %v118 = vrot.slane %v117, 4
    %v119 = vadd.f32 %v117, %v118
    %v120 = vrot.slane %v119, 2
    %v121 = vadd.f32 %v119, %v120
    %v122 = vrot.slane %v121, 1
    %v123 = vadd.f32 %v121, %v122
    %v124 = vmul.f32 %v123, 0.125
    %vm125 = vcmask 0
    %126 = vst.msk [vmem:[#allocation5] sm:$0x1] %vm125, %v124
    %v127 = vsel %vm33, %v30, 0.0
    %v128 = vrot.slane %v127, 4
    %v129 = vadd.f32 %v127, %v128
    %v130 = vrot.slane %v129, 2
    %v131 = vadd.f32 %v129, %v130
    %v132 = vrot.slane %v131, 1
    %v133 = vadd.f32 %v131, %v132
    %v134 = vsel %vm33, %v32, 0.0
    %v135 = vrot.slane %v134, 4
    %v136 = vadd.f32 %v134, %v135
    %v137 = vrot.slane %v136, 2
    %v138 = vadd.f32 %v136, %v137
    %v139 = vrot.slane %v138, 1
    %v140 = vadd.f32 %v138, %v139
    %v141 = vmul.f32 %v30, %v30
    %v142 = vsel %vm33, %v141, 0.0
    %143 = vadd.xlane.f32.xlu0 %v142
    %v144 = vpop.xlane.xlu0 %143
    %v145 = vrot.slane %v144, 4
    %v146 = vadd.f32 %v144, %v145
    %v147 = vrot.slane %v146, 2
    %v148 = vadd.f32 %v146, %v147
    %v149 = vrot.slane %v148, 1
    %v150 = vadd.f32 %v148, %v149
    %v151 = vmul.f32 %v32, %v32
    %v152 = vsel %vm33, %v151, 0.0
    %153 = vadd.xlane.f32.xlu0 %v152
    %v154 = vpop.xlane.xlu0 %153
    %v155 = vrot.slane %v154, 4
    %v156 = vadd.f32 %v154, %v155
    %v157 = vrot.slane %v156, 2
    %v158 = vadd.f32 %v156, %v157
    %v159 = vrot.slane %v158, 1
    %v160 = vadd.f32 %v158, %v159
    %v161 = vrcp.pop %v150
    %v162 = vmul.f32 1.0, %v161
    %v163 = vrcp.pop %v160
    %v164 = vmul.f32 1.0, %v163
    %v165 = vmul.f32 %v150, %v160
    %v166 = vrsqrt.pop %v165
    %v167 = vmul.f32 %v165, %v166
    %vm168 = vcmp.eq.f32.partialorder %v165, inf
    %v169 = vsel %vm168, %v165, %v167
    %vm170 = vcmp.eq.f32.partialorder %v165, 0.0
    %v171 = vand.u32 %v165, 2147483648
    %v172 = vsel %vm170, %v171, %v169
    %v173 = vrcp.pop %v172
    %v174 = vmul.f32 1.0, %v173
    %v175 = vmul.f32 %v30, %v32
    %v176 = vsel %vm33, %v175, 0.0
    %177 = vadd.xlane.f32.xlu0 %v176
    %v178 = vpop.xlane.xlu0 %177
    %v179 = vmul.f32 %v178, %v174
    %v180 = vsub.f32 %v133, %v30
    %v181 = vmul.f32 %v30, %v180
    %v182 = vsel %vm33, %v181, 0.0
    %183 = vadd.xlane.f32.xlu0 %v182
    %v184 = vpop.xlane.xlu0 %183
    %v185 = vsub.f32 %v140, %v32
    %v186 = vmul.f32 %v32, %v185
    %v187 = vsel %vm33, %v186, 0.0
    %188 = vadd.xlane.f32.xlu0 %v187
    %v189 = vpop.xlane.xlu0 %188
    %v190 = vmul.f32 %v184, %v162
    %v191 = vmul.f32 %v189, %v164
    %v192 = vadd.f32 %v190, %v191
    %v193 = vmul.f32 %v192, 0.0625
    %v194 = vsub.f32 %v193, %v179
    %v195 = vand.u32 2147483647, %v194
    %v196 = vsub.f32 0.0, %v195
    %v197 = vmul.f32 %v196, 1.442695
    %v198 = vpow.pop %v197
    %v199 = vadd.f32 %v198, 1.0
    %v200 = vlog2.pop %v199
    %v201 = vmul.f32 %v200, 0.6931472
    %v202 = vmul.f32 -0.5, %v198
    %v203 = vadd.f32 %v202, 1.0
    %v204 = vmul.f32 %v203, %v198
    %v205 = vand.u32 2147483647, %v198
    %vm206 = vcmp.lt.f32.partialorder %v205, 0.0004427343
    %v207 = vsel %vm206, %v204, %v201
    %v208 = vmax.f32 %v194, 0.0
    %v209 = vadd.f32 %v207, %v208
    %v210 = vadd.f32 %v209, 0.0
    %v211 = vrot.slane %v210, 4
    %v212 = vadd.f32 %v210, %v211
    %v213 = vrot.slane %v212, 2
    %v214 = vadd.f32 %v212, %v213
    %v215 = vrot.slane %v214, 1
    %v216 = vadd.f32 %v214, %v215
    %v217 = vmul.f32 %v216, 0.125
    %218 = vst.msk [vmem:[#allocation6] sm:$0x1] %vm125, %v217
    // Predicated region
    $region10: #{tpu_custom_call.1} parent=1 // pred_check
      _
    $region11: #{tpu_custom_call.1} parent=1 // pred_check_branch
      %220 = sbr.rel (0) target = $region13
    $region12: #{tpu_custom_call.1} parent=1 // pred_region
      %s222 = ssub.s32 16, 16
      %223 = vsyncadd [#allocation4], %s222
      %s225 = sshll.u32 [#allocation5], 4
      %s226 = int_to_ptr.vmem [resolvable:$true] %s225
      %228 = dma.vmem_to_hbm [thread:$0]  %s226, 16, %s1, [#allocation4]
    $region13: #{tpu_custom_call.1} parent=1 // pred_fallthru
      _
    // Predicated region
    $region14: #{tpu_custom_call.1} parent=1 // pred_check
      _
    $region15: #{tpu_custom_call.1} parent=1 // pred_check_branch
      %230 = sbr.rel (0) target = $region17
    $region16: #{tpu_custom_call.1} parent=1 // pred_region
      %s232 = ssub.s32 16, 16
      %233 = vsyncadd [#allocation7], %s232
      %s235 = sshll.u32 [#allocation6], 4
      %s236 = int_to_ptr.vmem [resolvable:$true] %s235
      %238 = dma.vmem_to_hbm [thread:$0]  %s236, 16, %s2, [#allocation7]
    $region17: #{tpu_custom_call.1} parent=1 // pred_fallthru
      _
    // Predicated region
    $region18: #{tpu_custom_call.1} parent=1 // pred_check
      _
    $region19: #{tpu_custom_call.1} parent=1 // pred_check_branch
      %240 = sbr.rel (0) target = $region21
    $region20: #{tpu_custom_call.1} parent=1 // pred_region
      %241 = dma.done [#allocation4], 16
    $region21: #{tpu_custom_call.1} parent=1 // pred_fallthru
      _
    // Predicated region
    $region22: #{tpu_custom_call.1} parent=1 // pred_check
      _
    $region23: #{tpu_custom_call.1} parent=1 // pred_check_branch
      %243 = sbr.rel (0) target = $region25
    $region24: #{tpu_custom_call.1} parent=1 // pred_region
      %244 = dma.done [#allocation7], 16
    $region25: #{tpu_custom_call.1} parent=1 // pred_fallthru
      _
    %245 = vsyncpa [#allocation3], 1
    %246 = vsyncpa [#allocation4], 1
    %247 = vsyncpa [#allocation7], 1

</llo_original>
